<compile_context>
chip_gen: v6e
topology: v6e:2x2x1
jax: 0.10.0
libtpu: 0.0.40
codegen_flags: <defaults>
</compile_context>

<pallas_src>
import jax
import jax.numpy as jnp
from jax.experimental import pallas as pl
from jax.experimental.pallas import tpu as pltpu


def linear_kernel(x_ref, w_ref, b_ref, o_ref):
    # x_ref: (B, C_in)     f32 in VMEM
    # w_ref: (C_in, C_out) f32 in VMEM
    # b_ref: (1, C_out)    f32 in VMEM
    # o_ref: (B, C_out)    f32 in VMEM
    acc = jnp.dot(x_ref[...], w_ref[...], preferred_element_type=jnp.float32)
    # Single broadcast add for the bias epilogue; cast once at the store.
    o_ref[...] = (acc + b_ref[...]).astype(o_ref.dtype)


def dummy_model_forward(x, w_t, b):
    """Pallas equivalent of DummyModel.forward (single nn.Linear).

    The whole problem (~5 KB) fits in one VMEM tile, so this is a single
    gridless pallas_call with whole-array blocks.
    """
    B, C_in = x.shape
    C_out = w_t.shape[1]
    b2d = b.reshape(1, C_out)  # (1, C_out) VMEM tile, broadcast-added in kernel

    bytes_accessed = 4 * (B * C_in + C_in * C_out + C_out + B * C_out)
    return pl.pallas_call(
        linear_kernel,
        out_shape=jax.ShapeDtypeStruct((B, C_out), x.dtype),
        in_specs=[
            pl.BlockSpec(memory_space=pltpu.MemorySpace.VMEM),   # x
            pl.BlockSpec(memory_space=pltpu.MemorySpace.VMEM),   # w_t
            pl.BlockSpec(memory_space=pltpu.MemorySpace.VMEM),   # bias (1, C_out)
        ],
        out_specs=pl.BlockSpec(memory_space=pltpu.MemorySpace.VMEM),
        cost_estimate=pl.CostEstimate(
            flops=2 * B * C_in * C_out,
            bytes_accessed=bytes_accessed,
            transcendentals=0,
        ),
    )(x, w_t, b2d)


if __name__ == "__main__":
    in_channels = 120
    out_channels = 2
    batch = 8

    key = jax.random.PRNGKey(0)
    kx, kw, kb = jax.random.split(key, 3)

    # Deterministic parameter init (uniform, like PyTorch's default Linear init range).
    bound = 1.0 / (in_channels ** 0.5)
    w = jax.random.uniform(kw, (out_channels, in_channels), jnp.float32, -bound, bound)
    b = jax.random.uniform(kb, (out_channels,), jnp.float32, -bound, bound)
    w_t = w.T  # (in_channels, out_channels)

    x = jax.random.normal(kx, (batch, in_channels), jnp.float32)

    out = dummy_model_forward(x, w_t, b)
    out = jax.block_until_ready(out)

    # Reference check in plain JAX.
    ref = x @ w.T + b
    assert out.shape == (batch, out_channels)
    assert jnp.allclose(out, ref, atol=1e-5, rtol=1e-5)

    print("KERNEL_OK")
</pallas_src>

<mosaic_0001>
module attributes {stable_mosaic.version = 11 : i64} {
  func.func @linear_kernel(%arg0: memref<8x120xf32, #tpu.memory_space<vmem>>, %arg1: memref<120x2xf32, #tpu.memory_space<vmem>>, %arg2: memref<1x2xf32, #tpu.memory_space<vmem>>, %arg3: memref<8x2xf32, #tpu.memory_space<vmem>>) attributes {dimension_semantics = [], scalar_prefetch = 0 : i64, scratch_operands = 0 : i64, tpu.core_type = #tpu.core_type<tc>} {
    %c0 = arith.constant 0 : index
    %c0_0 = arith.constant 0 : index
    %0 = vector.load %arg0[%c0, %c0_0] : memref<8x120xf32, #tpu.memory_space<vmem>>, vector<8x120xf32>
    %c0_1 = arith.constant 0 : index
    %c0_2 = arith.constant 0 : index
    %1 = vector.load %arg1[%c0_1, %c0_2] : memref<120x2xf32, #tpu.memory_space<vmem>>, vector<120x2xf32>
    %cst = arith.constant dense<0.000000e+00> : vector<8x2xf32>
    %2 = tpu.matmul %0, %1, %cst {dimension_numbers = #tpu.dot_dimension_numbers<[1], [0], [0], [1], [0, 0, 1, 1], [], []>} : vector<8x120xf32>, vector<120x2xf32>, vector<8x2xf32> -> vector<8x2xf32>
    %c0_3 = arith.constant 0 : index
    %c0_4 = arith.constant 0 : index
    %3 = vector.load %arg2[%c0_3, %c0_4] : memref<1x2xf32, #tpu.memory_space<vmem>>, vector<1x2xf32>
    %4 = vector.broadcast %3 : vector<1x2xf32> to vector<8x2xf32>
    %5 = arith.addf %2, %4 : vector<8x2xf32>
    %c0_5 = arith.constant 0 : index
    %c0_6 = arith.constant 0 : index
    %6 = vector.load %arg3[%c0_5, %c0_6] : memref<8x2xf32, #tpu.memory_space<vmem>>, vector<8x2xf32>
    tpu.vector_store %arg3[%c0_5, %c0_6], %5 {strides = array<i32>} : memref<8x2xf32, #tpu.memory_space<vmem>>, vector<8x2xf32>,
    return
  }
}

</mosaic_0001>

<llo_original>
// kernel: tpu_custom_call.1
$region0: #{tpu_custom_call.1}
  #allocation0 [shape = 'u32[]', space=smem, size = 0x4, offset = 0x4, fixed_abs, tag = 'smem constant byte address 0x4 - core index']
  #allocation1 [shape = 'u32[144,128]{1,0:T(1,128)}', space=vmem, size = 0x12000, scoped, tag = 'internal scratch']
  %s0 = inlined_call_operand.vmem [shape: f32[8,120], index: 0, kind: input, shape index: {}]
  %s1 = inlined_call_operand.vmem [shape: f32[120,2], index: 1, kind: input, shape index: {}]
  %s2 = inlined_call_operand.vmem [shape: f32[1,2], index: 2, kind: input, shape index: {}]
  %s3 = inlined_call_operand.vmem [shape: f32[8,2], index: 3, kind: output, shape index: {}]
  %s4 = sld [smem:[#allocation0]]
  $region22: #{tpu_custom_call.1} parent=0
    _
  %s6 = ssub.s32 1, %s4
  %s7 = scalar_select 0, %s6, %s4
  // Predicated region
  $region2: #{tpu_custom_call.1} parent=0 // pred_check
    _
  $region3: #{tpu_custom_call.1} parent=0 // pred_check_branch
    %9 = sbr.rel (0) target = $region5
  $region4: #{tpu_custom_call.1} parent=0 // pred_region
    _
  $region5: #{tpu_custom_call.1} parent=0 // pred_fallthru
    _
  // Predicated region
  $region6: #{tpu_custom_call.1} parent=0 // pred_check
    _
  $region7: #{tpu_custom_call.1} parent=0 // pred_check_branch
    %11 = sbr.rel (0) target = $region9
  $region8: #{tpu_custom_call.1} parent=0 // pred_region
    _
  $region9: #{tpu_custom_call.1} parent=0 // pred_fallthru
    _
  // Predicated region
  $region10: #{tpu_custom_call.1} parent=0 // pred_check
    _
  $region11: #{tpu_custom_call.1} parent=0 // pred_check_branch
    %13 = sbr.rel (0) target = $region13
  $region12: #{tpu_custom_call.1} parent=0 // pred_region
    _
  $region13: #{tpu_custom_call.1} parent=0 // pred_fallthru
    _
  %v14 = vld [vmem:[%s0] sm:$0xff]
  %v15 = vld [vmem:[%s1] sm:$0xff]
  %v16 = vld [vmem:[%s1 + $0x8] sm:$0xff]
  %v17 = vld [vmem:[%s1 + $0x10] sm:$0xff]
  %v18 = vld [vmem:[%s1 + $0x18] sm:$0xff]
  %v19 = vld [vmem:[%s1 + $0x20] sm:$0xff]
  %v20 = vld [vmem:[%s1 + $0x28] sm:$0xff]
  %v21 = vld [vmem:[%s1 + $0x30] sm:$0xff]
  %v22 = vld [vmem:[%s1 + $0x38] sm:$0xff]
  %v23 = vld [vmem:[%s1 + $0x40] sm:$0xff]
  %v24 = vld [vmem:[%s1 + $0x48] sm:$0xff]
  %v25 = vld [vmem:[%s1 + $0x50] sm:$0xff]
  %v26 = vld [vmem:[%s1 + $0x58] sm:$0xff]
  %v27 = vld [vmem:[%s1 + $0x60] sm:$0xff]
  %v28 = vld [vmem:[%s1 + $0x68] sm:$0xff]
  %v29 = vld [vmem:[%s1 + $0x70] sm:$0xff]
  %v30 = vld [vmem:[%s2] sm:$0x1]
  %v32 = vlaneseq
  %v33 = vshrl.u32 %v32, 7
  %v34 = vsub.s32 0, %v33
  %v35 = vrot.slane %v30, %v34
  %vm37 = vcmask 982016
  %v39 = vsel %vm37, %v14, 0
  %41 = vmatprep.subr.mxu0 0.0
  %42 = vmatpush1.msra.mxu0 0.0
  %43 = vmatprep.subr.mxu0 0.0
  %44 = vmatpush1.msra.mxu0 %v29
  %45 = vmatprep.subr.mxu0 0.0
  %46 = vmatpush1.msra.mxu0 %v28
  %47 = vmatprep.subr.mxu0 0.0
  %48 = vmatpush1.msra.mxu0 %v27
  %49 = vmatprep.subr.mxu0 0.0
  %50 = vmatpush1.msra.mxu0 %v26
  %51 = vmatprep.subr.mxu0 0.0
  %52 = vmatpush1.msra.mxu0 %v25
  %53 = vmatprep.subr.mxu0 0.0
  %54 = vmatpush1.msra.mxu0 %v24
  %55 = vmatprep.subr.mxu0 0.0
  %56 = vmatpush1.msra.mxu0 %v23
  %57 = vmatprep.subr.mxu0 0.0
  %58 = vmatpush1.msra.mxu0 %v22
  %59 = vmatprep.subr.mxu0 0.0
  %60 = vmatpush1.msra.mxu0 %v21
  %61 = vmatprep.subr.mxu0 0.0
  %62 = vmatpush1.msra.mxu0 %v20
  %63 = vmatprep.subr.mxu0 0.0
  %64 = vmatpush1.msra.mxu0 %v19
  %65 = vmatprep.subr.mxu0 0.0
  %66 = vmatpush1.msra.mxu0 %v18
  %67 = vmatprep.subr.mxu0 0.0
  %68 = vmatpush1.msra.mxu0 %v17
  %69 = vmatprep.subr.mxu0 0.0
  %70 = vmatpush1.msra.mxu0 %v16
  %71 = vmatprep.subr.mxu0 0.0
  %72 = vmatpush1.msra.mxu0 %v15
  %73 = vmatprep.subr.mxu0 0.0
  %74 = vmatpush2.msra.mxu0 0.0
  %75 = vmatprep.subr.mxu0 0.0
  %76 = vmatpush2.msra.mxu0 0.0
  %77 = vmatprep.subr.mxu0 0.0
  %78 = vmatpush2.msra.mxu0 0.0
  %79 = vmatprep.subr.mxu0 0.0
  %80 = vmatpush2.msra.mxu0 0.0
  %81 = vmatprep.subr.mxu0 0.0
  %82 = vmatpush2.msra.mxu0 0.0
  %83 = vmatprep.subr.mxu0 0.0
  %84 = vmatpush2.msra.mxu0 0.0
  %85 = vmatprep.subr.mxu0 0.0
  %86 = vmatpush2.msra.mxu0 0.0
  %87 = vmatprep.subr.mxu0 0.0
  %88 = vmatpush2.msra.mxu0 0.0
  %89 = vmatprep.subr.mxu0 0.0
  %90 = vmatpush2.msra.mxu0 0.0
  %91 = vmatprep.subr.mxu0 0.0
  %92 = vmatpush2.msra.mxu0 0.0
  %93 = vmatprep.subr.mxu0 0.0
  %94 = vmatpush2.msra.mxu0 0.0
  %95 = vmatprep.subr.mxu0 0.0
  %96 = vmatpush2.msra.mxu0 0.0
  %97 = vmatprep.subr.mxu0 0.0
  %98 = vmatpush2.msra.mxu0 0.0
  %99 = vmatprep.subr.mxu0 0.0
  %100 = vmatpush2.msra.mxu0 0.0
  %101 = vmatprep.subr.mxu0 0.0
  %102 = vmatpush2.msra.mxu0 0.0
  %103 = vmatprep.subr.mxu0 0.0
  %104 = vmatpush2.msra.mxu0 0.0
  %105 = vmatprep.mubr.f32.mxu0 0.0
  %106 = vmatmul.mubr.f32.gmra.mxu0 %v39
  %v107 = vpop.f32.mrf.mxu0
  %v108 = vadd.f32 %v35, %v107
  %v109 = vpop.f32.mrf.mxu0
  %110 = vdwg.mxu0
  %vm111 = vcmask 15360
  %112 = vst.msk [vmem:[%s3] sm:$0xff] %vm111, %v108
  // Predicated region
  $region14: #{tpu_custom_call.1} parent=0 // pred_check
    _
  $region15: #{tpu_custom_call.1} parent=0 // pred_check_branch
    %114 = sbr.rel (0) target = $region17
  $region16: #{tpu_custom_call.1} parent=0 // pred_region
    _
  $region17: #{tpu_custom_call.1} parent=0 // pred_fallthru
    _
  // Predicated region
  $region18: #{tpu_custom_call.1} parent=0 // pred_check
    _
  $region19: #{tpu_custom_call.1} parent=0 // pred_check_branch
    %116 = sbr.rel (0) target = $region21
  $region20: #{tpu_custom_call.1} parent=0 // pred_region
    _
  $region21: #{tpu_custom_call.1} parent=0 // pred_fallthru
    _

</llo_original>
